<compile_context>
chip_gen: v6e
topology: v6e:2x2x1
jax: 0.10.0
libtpu: 0.0.40
codegen_flags: <defaults>
</compile_context>

<pallas_src>
import math
import numpy as np

import jax
import jax.numpy as jnp
from jax.experimental import pallas as pl
from jax.experimental.pallas import tpu as pltpu


# ----------------------------------------------------------------------------
# Host-side IoU helpers (mirror the PyTorch reference utilities)
# ----------------------------------------------------------------------------
def multi_bbox_ious(boxes1, boxes2, x1y1x2y2=True):
    """boxes are (4, N) numpy arrays."""
    if x1y1x2y2:
        mx = np.minimum(boxes1[0], boxes2[0])
        Mx = np.maximum(boxes1[2], boxes2[2])
        my = np.minimum(boxes1[1], boxes2[1])
        My = np.maximum(boxes1[3], boxes2[3])
        w1 = boxes1[2] - boxes1[0]
        h1 = boxes1[3] - boxes1[1]
        w2 = boxes2[2] - boxes2[0]
        h2 = boxes2[3] - boxes2[1]
    else:
        mx = np.minimum(boxes1[0] - boxes1[2] / 2.0, boxes2[0] - boxes2[2] / 2.0)
        Mx = np.maximum(boxes1[0] + boxes1[2] / 2.0, boxes2[0] + boxes2[2] / 2.0)
        my = np.minimum(boxes1[1] - boxes1[3] / 2.0, boxes2[1] - boxes2[3] / 2.0)
        My = np.maximum(boxes1[1] + boxes1[3] / 2.0, boxes2[1] + boxes2[3] / 2.0)
        w1, h1 = boxes1[2], boxes1[3]
        w2, h2 = boxes2[2], boxes2[3]
    uw = Mx - mx
    uh = My - my
    cw = w1 + w2 - uw
    ch = h1 + h2 - uh
    bad = (cw <= 0) | (ch <= 0)
    carea = np.where(bad, 0.0, cw * ch)
    uarea = w1 * h1 + w2 * h2 - carea
    return carea / uarea


def bbox_iou(box1, box2, x1y1x2y2=True):
    if x1y1x2y2:
        mx = min(box1[0], box2[0]); Mx = max(box1[2], box2[2])
        my = min(box1[1], box2[1]); My = max(box1[3], box2[3])
        w1 = box1[2] - box1[0]; h1 = box1[3] - box1[1]
        w2 = box2[2] - box2[0]; h2 = box2[3] - box2[1]
    else:
        mx = min(box1[0] - box1[2] / 2.0, box2[0] - box2[2] / 2.0)
        Mx = max(box1[0] + box1[2] / 2.0, box2[0] + box2[2] / 2.0)
        my = min(box1[1] - box1[3] / 2.0, box2[1] - box2[3] / 2.0)
        My = max(box1[1] + box1[3] / 2.0, box2[1] + box2[3] / 2.0)
        w1, h1, w2, h2 = box1[2], box1[3], box2[2], box2[3]
    uw = Mx - mx
    uh = My - my
    cw = w1 + w2 - uw
    ch = h1 + h2 - uh
    if cw <= 0 or ch <= 0:
        return 0.0
    carea = cw * ch
    uarea = w1 * h1 + w2 * h2 - carea
    return float(carea / uarea)


# ----------------------------------------------------------------------------
# VMEM budget / group-block planning
# ----------------------------------------------------------------------------
def _vmem_limit_bytes():
    """Per-generation scoped-VMEM limit (v7x only has 64 MiB physical)."""
    cap = 128 * 1024 * 1024
    try:
        info = pltpu.get_tpu_info()
        cap = int(getattr(info, "vmem_capacity_bytes", cap))
    except Exception:
        pass
    return int(min(max(cap // 2, 16 * 1024 * 1024), 64 * 1024 * 1024))


def _divisor_mult8(n, cap):
    """Largest multiple-of-8 divisor of n that is <= cap (0 if none)."""
    d = (min(cap, n) // 8) * 8
    while d >= 8:
        if n % d == 0:
            return d
        d -= 8
    return 0


def _plan_groups(G, per_group_bytes, budget_bytes):
    """Return (ncores, gb, steps) with ncores * gb * steps == G.

    gb is either a multiple of 8 (legal sublane block) or the full range.
    A 2-way split is preferred so dual-TensorCore chips (v7x) run the
    HBM-bound loss reduction on both cores.
    """
    gb_max = max(1, budget_bytes // max(per_group_bytes, 1))
    if G % 16 == 0:
        gb = _divisor_mult8(G // 2, gb_max)
        if gb:
            return 2, gb, (G // 2) // gb
    if G <= gb_max:
        return 1, G, 1                     # single full-dim block, any G
    gb = _divisor_mult8(G, gb_max)
    if gb:
        return 1, gb, G // gb
    return 1, G, 1                         # fallback: one oversized block


# ----------------------------------------------------------------------------
# Pallas kernel 1: pred-box decode
#   in : o5  (G, 5+nC, HW) raw output (free NCHW reshape)
#        gxy (2, HW)  precomputed grid-cell offsets (hoisted off the VALU)
#        awh (G, 2)   per-(b,a) anchor sizes
#   out: pred (4, G, HW) = [sig(x)+gx, sig(y)+gy, exp(w)*aw, exp(h)*ah]
# ----------------------------------------------------------------------------
def _decode_kernel(o_ref, gxy_ref, awh_ref, pred_ref):
    v = o_ref[:, 0:5, :]                              # skip the class rows
    sx = 1.0 / (1.0 + jnp.exp(-v[:, 0, :]))           # exact sigmoid
    sy = 1.0 / (1.0 + jnp.exp(-v[:, 1, :]))
    ew = jnp.exp(v[:, 2, :])
    eh = jnp.exp(v[:, 3, :])
    pred_ref[0, :, :] = sx + gxy_ref[0:1, :]
    pred_ref[1, :, :] = sy + gxy_ref[1:2, :]
    pred_ref[2, :, :] = ew * awh_ref[:, 0:1]
    pred_ref[3, :, :] = eh * awh_ref[:, 1:2]


def _decode_call(o5, gxy, awh, gb, nblocks, vmem_limit):
    G, C, HW = o5.shape
    return pl.pallas_call(
        _decode_kernel,
        out_shape=jax.ShapeDtypeStruct((4, G, HW), jnp.float32),
        grid_spec=pltpu.PrefetchScalarGridSpec(
            num_scalar_prefetch=0,
            grid=(nblocks,),
            in_specs=[pl.BlockSpec((gb, C, HW), lambda g: (g, 0, 0)),
                      pl.BlockSpec((2, HW), lambda g: (0, 0)),
                      pl.BlockSpec((gb, 2), lambda g: (g, 0))],
            out_specs=pl.BlockSpec((4, gb, HW), lambda g: (0, g, 0))),
        compiler_params=pltpu.CompilerParams(
            dimension_semantics=("parallel",),
            vmem_limit_bytes=vmem_limit),
    )(o5, gxy, awh)


# ----------------------------------------------------------------------------
# Pallas kernel 2: masked MSE reductions (coord + conf)
#   in : o5  (G, 5+nC, HW) raw output (sigmoid re-applied in-kernel)
#        tgt (7, G, HW)  rows 0-3 tcoord, 4 tconf, 5 coord_mask, 6 conf_mask
#   out: (8*ncores, 128); row 8*c, lane 0 = partial loss_coord of core c,
#                         lane 1 = partial loss_conf of core c
# ----------------------------------------------------------------------------
def _make_loss_kernel(n_b, coord_scale):
    inv_b = 1.0 / float(n_b)
    cscale = float(coord_scale) * inv_b

    def kernel(o_ref, tgt_ref, out_ref, acc_ref):
        g = pl.program_id(1)

        @pl.when(g == 0)
        def _init():
            acc_ref[...] = jnp.zeros_like(acc_ref)

        v = o_ref[:, 0:5, :]
        sx = 1.0 / (1.0 + jnp.exp(-v[:, 0, :]))        # exact sigmoid
        sy = 1.0 / (1.0 + jnp.exp(-v[:, 1, :]))
        w = v[:, 2, :]
        h = v[:, 3, :]
        sc = 1.0 / (1.0 + jnp.exp(-v[:, 4, :]))

        t = tgt_ref[...]                               # (7, gb, HW)
        cm = t[5]
        fm = t[6]
        d_coord = ((sx - t[0]) ** 2 + (sy - t[1]) ** 2
                   + (w - t[2]) ** 2 + (h - t[3]) ** 2) * (cm * cm)
        d_conf = ((sc - t[4]) ** 2) * (fm * fm)

        lane = jax.lax.broadcasted_iota(jnp.int32, acc_ref.shape, 1)
        row = jax.lax.broadcasted_iota(jnp.int32, acc_ref.shape, 0)
        acc_ref[...] += jnp.where((row == 0) & (lane == 0), jnp.sum(d_coord),
                                  jnp.where((row == 0) & (lane == 1),
                                            jnp.sum(d_conf), 0.0))

        @pl.when(g == pl.num_programs(1) - 1)
        def _finalize():
            scale = jnp.where(lane == 0, cscale, inv_b)
            out_ref[...] = acc_ref[...] * scale

    return kernel


def _loss_call(o5, tgt, gb, ncores, steps, n_b, coord_scale, vmem_limit):
    G, C, HW = o5.shape
    return pl.pallas_call(
        _make_loss_kernel(n_b, coord_scale),
        out_shape=jax.ShapeDtypeStruct((8 * ncores, 128), jnp.float32),
        grid_spec=pltpu.PrefetchScalarGridSpec(
            num_scalar_prefetch=0,
            grid=(ncores, steps),
            in_specs=[pl.BlockSpec((gb, C, HW),
                                   lambda c, g, s=steps: (c * s + g, 0, 0)),
                      pl.BlockSpec((7, gb, HW),
                                   lambda c, g, s=steps: (0, c * s + g, 0))],
            out_specs=pl.BlockSpec((8, 128), lambda c, g: (c, 0)),
            scratch_shapes=[pltpu.VMEM((8, 128), jnp.float32)]),
        compiler_params=pltpu.CompilerParams(
            dimension_semantics=("parallel", "arbitrary"),
            vmem_limit_bytes=vmem_limit),
    )(o5, tgt)


# ----------------------------------------------------------------------------
# Pallas kernel 3: compacted cross-entropy over the <= 50*nB object cells
#   in : logits (Kp, nC), cls_idx (Kp,1) int32, valid (Kp,1)
#   out: (1,1) scalar = class_scale * sum_ce / nB
# ----------------------------------------------------------------------------
def _make_ce_kernel(class_scale, n_b):
    scale = float(class_scale) / float(n_b)

    def kernel(logits_ref, idx_ref, valid_ref, out_ref):
        logit = logits_ref[...]                               # (Kp, nC)
        m = jnp.max(logit, axis=1, keepdims=True)
        lse = m + jnp.log(jnp.sum(jnp.exp(logit - m), axis=1, keepdims=True))
        col = jax.lax.broadcasted_iota(jnp.int32, logit.shape, 1)
        picked = jnp.sum(jnp.where(col == idx_ref[...], logit, 0.0),
                         axis=1, keepdims=True)
        ce = (lse - picked) * valid_ref[...]
        out_ref[...] = jnp.sum(ce, keepdims=True) * scale

    return kernel


def _ce_call(logits, cls_idx, valid, class_scale, n_b, vmem_limit):
    kp, nc = logits.shape
    return pl.pallas_call(
        _make_ce_kernel(class_scale, n_b),
        out_shape=jax.ShapeDtypeStruct((1, 1), jnp.float32),
        grid_spec=pltpu.PrefetchScalarGridSpec(
            num_scalar_prefetch=0, grid=(1,),
            in_specs=[pl.BlockSpec((kp, nc), lambda i: (0, 0)),
                      pl.BlockSpec((kp, 1), lambda i: (0, 0)),
                      pl.BlockSpec((kp, 1), lambda i: (0, 0))],
            out_specs=pl.BlockSpec((1, 1), lambda i: (0, 0))),
        compiler_params=pltpu.CompilerParams(
            dimension_semantics=("arbitrary",),
            vmem_limit_bytes=vmem_limit),
    )(logits, cls_idx, valid)


# ----------------------------------------------------------------------------
# RegionLayer (JAX / Pallas version)
# ----------------------------------------------------------------------------
class RegionLayerPallas:
    def __init__(self, num_classes=0, anchors=(1.0,), num_anchors=1):
        self.num_classes = num_classes
        self.num_anchors = num_anchors
        self.anchor_step = len(anchors) // num_anchors
        self.anchors = np.asarray(anchors, np.float32).reshape(
            self.num_anchors, self.anchor_step)
        self.rescore = 1
        self.coord_scale = 1.0
        self.noobject_scale = 1.0
        self.object_scale = 5.0
        self.class_scale = 1.0
        self.thresh = 0.6
        # The given PyTorch reference never increments `seen` inside forward();
        # we mirror that behaviour exactly.
        self.seen = 0
        self._gxy_cache = {}
        self._awh_cache = {}

    # -- small cached constant tables -----------------------------------
    def _grid_table(self, nH, nW):
        key = (nH, nW)
        if key not in self._gxy_cache:
            hw = np.arange(nH * nW)
            tbl = np.stack([hw % nW, hw // nW]).astype(np.float32)   # (2, HW)
            self._gxy_cache[key] = jnp.asarray(tbl)
        return self._gxy_cache[key]

    def _anchor_table(self, nB):
        if nB not in self._awh_cache:
            awh = np.tile(self.anchors[:, 0:2], (nB, 1)).astype(np.float32)
            self._awh_cache[nB] = jnp.asarray(awh)                   # (G, 2)
        return self._awh_cache[nB]

    # -- host-side target building (data-dependent loops) ---------------
    def build_targets(self, pred_boxes, target, nH, nW):
        nB = target.shape[0]
        nA = self.num_anchors
        noobj_mask = np.ones((nB, nA, nH, nW), np.float32)
        obj_mask = np.zeros((nB, nA, nH, nW), np.float32)
        coord_mask = np.zeros((nB, nA, nH, nW), np.float32)
        tcoord = np.zeros((4, nB, nA, nH, nW), np.float32)
        tconf = np.zeros((nB, nA, nH, nW), np.float32)
        tcls = np.zeros((nB, nA, nH, nW), np.float32)
        nAnchors = nA * nH * nW
        nPixels = nH * nW
        nGT = 0
        nRecall = 0
        anchors = self.anchors
        if self.seen < 12800:
            tcoord[0].fill(0.5)
            tcoord[1].fill(0.5)
            coord_mask.fill(0.01)
        for b in range(nB):
            cur_pred_boxes = pred_boxes[b * nAnchors:(b + 1) * nAnchors].T
            cur_ious = np.zeros(nAnchors, np.float32)
            tbox = target[b].reshape(-1, 5)
            for t in range(50):
                if tbox[t][1] == 0:
                    break
                gx, gw = tbox[t][1] * nW, tbox[t][3] * nW
                gy, gh = tbox[t][2] * nH, tbox[t][4] * nH
                cur_gt_boxes = np.tile(
                    np.array([gx, gy, gw, gh], np.float32)[None, :],
                    (nAnchors, 1)).T
                cur_ious = np.maximum(
                    cur_ious,
                    multi_bbox_ious(cur_pred_boxes, cur_gt_boxes, x1y1x2y2=False))
            ignore_ix = (cur_ious > self.thresh).reshape(nA, nH, nW)
            noobj_mask[b][ignore_ix] = 0
            for t in range(50):
                if tbox[t][1] == 0:
                    break
                nGT += 1
                gx, gw = tbox[t][1] * nW, tbox[t][3] * nW
                gy, gh = tbox[t][2] * nH, tbox[t][4] * nH
                gi, gj = int(gx), int(gy)
                tmp_gt_boxes = np.tile(
                    np.array([0.0, 0.0, gw, gh], np.float32)[None, :],
                    (nA, 1)).T
                anchor_boxes = np.concatenate(
                    [np.zeros((nA, 2), np.float32), anchors], axis=1).T
                tmp_ious = multi_bbox_ious(anchor_boxes, tmp_gt_boxes,
                                           x1y1x2y2=False)
                best_iou = float(tmp_ious.max())
                best_n = int(np.argmax(tmp_ious))
                if self.anchor_step == 4:
                    tmp_ious_mask = tmp_ious == best_iou
                    if tmp_ious_mask.sum() > 0:
                        gt_pos = np.tile(
                            np.array([gi, gj, gx, gy], np.float32)[None, :],
                            (nA, 1)).T
                        an_pos = anchor_boxes[4:6]
                        dist = ((gt_pos[0] + an_pos[0] - gt_pos[2]) ** 2
                                + (gt_pos[1] + an_pos[1] - gt_pos[3]) ** 2)
                        dist = np.where(tmp_ious_mask, dist, 10000.0)
                        best_n = int(np.argmin(dist))
                gt_box = np.array([gx, gy, gw, gh], np.float32)
                pred_box = pred_boxes[b * nAnchors + best_n * nPixels
                                      + gj * nW + gi]
                iou = bbox_iou(gt_box, pred_box, x1y1x2y2=False)
                obj_mask[b, best_n, gj, gi] = 1
                noobj_mask[b, best_n, gj, gi] = 0
                coord_mask[b, best_n, gj, gi] = 2.0 - tbox[t][3] * tbox[t][4]
                tcoord[0, b, best_n, gj, gi] = gx - gi
                tcoord[1, b, best_n, gj, gi] = gy - gj
                tcoord[2, b, best_n, gj, gi] = math.log(gw / anchors[best_n][0])
                tcoord[3, b, best_n, gj, gi] = math.log(gh / anchors[best_n][1])
                tcls[b, best_n, gj, gi] = tbox[t][0]
                tconf[b, best_n, gj, gi] = iou if self.rescore else 1.0
                if iou > 0.5:
                    nRecall += 1
        return (nGT, nRecall, obj_mask, noobj_mask, coord_mask,
                tcoord, tconf, tcls)

    # -- forward ---------------------------------------------------------
    def forward(self, output, target):
        output = jnp.asarray(output, jnp.float32)
        nB = output.shape[0]
        nA = self.num_anchors
        nC = self.num_classes
        nH = output.shape[2]
        nW = output.shape[3]
        G = nB * nA
        HW = nH * nW
        C = 5 + nC

        # free reshape of the contiguous NCHW output into group-major 3-D
        o5 = output.reshape(G, C, HW)

        # per-generation VMEM budget and group-block plan
        vmem_limit = _vmem_limit_bytes()
        per_group_bytes = (C + 7) * HW * 4
        ncores, gb, steps = _plan_groups(G, per_group_bytes, vmem_limit // 6)
        needed = (2 * C + 2 * 7 + 2 * 4) * gb * HW * 4 + (1 << 20)
        vmem_limit = int(max(vmem_limit, needed))

        gxy = self._grid_table(nH, nW)                 # (2, HW)
        awh = self._anchor_table(nB)                   # (G, 2)

        # Kernel 1: pred-box decode (4-row output only; no act stream)
        pred = _decode_call(o5, gxy, awh, gb, ncores * steps, vmem_limit)

        # device -> host only for pred_boxes (needed by host build_targets)
        pred_np = np.asarray(pred)                                     # (4,G,HW)
        pred_boxes = np.ascontiguousarray(
            pred_np.transpose(1, 2, 0).reshape(-1, 4))                 # (N,4)
        target_np = np.asarray(target, np.float32).reshape(nB, -1)

        (nGT, nRecall, obj_mask, noobj_mask, coord_mask,
         tcoord, tconf, tcls) = self.build_targets(pred_boxes, target_np,
                                                   nH, nW)

        # pack all host-built target/mask streams into ONE (7,G,HW) slab
        # TODO(synk): could be packed as bfloat16 to halve the H2D upload at a
        #             small precision cost vs. the float32 PyTorch reference.
        tgt = np.empty((7, G, HW), np.float32)
        tgt[0:4] = tcoord.reshape(4, G, HW)
        tgt[4] = tconf.reshape(G, HW)
        tgt[5] = coord_mask.reshape(G, HW)
        tgt[6] = (self.object_scale * obj_mask
                  + self.noobject_scale * noobj_mask).reshape(G, HW)

        # Kernel 2: masked MSE reductions directly on the raw output rows
        out2 = _loss_call(o5, jnp.asarray(tgt), gb, ncores, steps,
                          nB, self.coord_scale, vmem_limit)
        loss_coord = jnp.sum(out2[0::8, 0])            # sum per-core partials
        loss_conf = jnp.sum(out2[0::8, 1])

        # Kernel 3: compacted cross-entropy over the object cells
        if nC > 0:
            bs, a_s, js, is_ = np.nonzero(obj_mask)
            K = int(bs.shape[0])
            Kp = max(8, ((K + 7) // 8) * 8)
            g_idx = np.zeros(Kp, np.int32)
            hw_idx = np.zeros(Kp, np.int32)
            cls_idx = np.zeros((Kp, 1), np.int32)
            valid = np.zeros((Kp, 1), np.float32)
            if K > 0:
                g_idx[:K] = (bs * nA + a_s).astype(np.int32)
                hw_idx[:K] = (js * nW + is_).astype(np.int32)
                cls_idx[:K, 0] = tcls[bs, a_s, js, is_].astype(np.int32)
                valid[:K, 0] = 1.0

            o_flat = o5.reshape(G * C, HW)                             # free
            row_idx = (jnp.asarray(g_idx)[:, None] * C + 5
                       + jnp.arange(nC, dtype=jnp.int32)[None, :])     # (Kp,nC)
            col_idx = jnp.asarray(hw_idx)[:, None]                     # (Kp,1)
            logits = o_flat[row_idx, col_idx]                          # gather

            lcls = _ce_call(logits, jnp.asarray(cls_idx), jnp.asarray(valid),
                            self.class_scale, nB, vmem_limit)
            loss_cls = lcls[0, 0]
        else:
            loss_cls = jnp.float32(0.0)

        return loss_coord + loss_conf + loss_cls


# ----------------------------------------------------------------------------
if __name__ == "__main__":
    key = jax.random.PRNGKey(0)
    nB, nA, nC, nH, nW = 2, 2, 4, 8, 8
    anchors = [1.0, 1.5, 2.0, 2.5]          # (w, h) per anchor, anchor_step=2

    output = 0.5 * jax.random.normal(
        key, (nB, nA * (5 + nC), nH, nW), dtype=jnp.float32)

    # target layout: per batch, 50 boxes x 5 = [class, x, y, w, h] (normalized)
    target = np.zeros((nB, 50 * 5), np.float32)
    target[0, 0:5] = [1.0, 0.50, 0.50, 0.30, 0.40]
    target[0, 5:10] = [2.0, 0.25, 0.75, 0.20, 0.20]
    target[1, 0:5] = [0.0, 0.60, 0.40, 0.50, 0.30]

    layer = RegionLayerPallas(num_classes=nC, anchors=anchors, num_anchors=nA)
    loss = layer.forward(output, jnp.asarray(target))
    loss = jax.block_until_ready(loss)
    assert np.isfinite(float(loss))
    print("KERNEL_OK")
</pallas_src>

<mosaic_0001>
module attributes {stable_mosaic.version = 11 : i64} {
  func.func @_decode_kernel(%arg0: i32, %arg1: memref<4x9x64xf32, #tpu.memory_space<vmem>>, %arg2: memref<2x64xf32, #tpu.memory_space<vmem>>, %arg3: memref<4x2xf32, #tpu.memory_space<vmem>>, %arg4: memref<4x4x64xf32, #tpu.memory_space<vmem>>) attributes {dimension_semantics = [#tpu.dimension_semantics<parallel>], iteration_bounds = array<i64: 1>, scalar_prefetch = 0 : i64, scratch_operands = 0 : i64, tpu.core_type = #tpu.core_type<tc>, window_params = [{transform_indices = @transform_0, window_bounds = array<i64: 4, 9, 64>}, {pipeline_mode = #tpu.pipeline_mode<synchronous>, transform_indices = @transform_1, window_bounds = array<i64: 2, 64>}, {transform_indices = @transform_2, window_bounds = array<i64: 4, 2>}, {transform_indices = @transform_3, window_bounds = array<i64: 4, 4, 64>}]} {
    %c0 = arith.constant 0 : index
    %c0_0 = arith.constant 0 : index
    %c0_1 = arith.constant 0 : index
    %0 = vector.load %arg1[%c0, %c0_0, %c0_1] : memref<4x9x64xf32, #tpu.memory_space<vmem>>, vector<4x5x64xf32>
    %1 = vector.extract_strided_slice %0 {offsets = [0, 0, 0], sizes = [4, 1, 64], strides = [1, 1, 1]} : vector<4x5x64xf32> to vector<4x1x64xf32>
    %2 = vector.shape_cast %1 : vector<4x1x64xf32> to vector<4x64xf32>
    %cst = arith.constant 0.000000e+00 : f32
    %3 = vector.broadcast %cst : f32 to vector<4x64xf32>
    %4 = arith.subf %3, %2 : vector<4x64xf32>
    %5 = math.exp %4 : vector<4x64xf32>
    %cst_2 = arith.constant 1.000000e+00 : f32
    %6 = vector.broadcast %cst_2 : f32 to vector<4x64xf32>
    %7 = arith.addf %6, %5 : vector<4x64xf32>
    %cst_3 = arith.constant 1.000000e+00 : f32
    %8 = vector.broadcast %cst_3 : f32 to vector<4x64xf32>
    %9 = arith.divf %8, %7 : vector<4x64xf32>
    %10 = vector.extract_strided_slice %0 {offsets = [0, 1, 0], sizes = [4, 1, 64], strides = [1, 1, 1]} : vector<4x5x64xf32> to vector<4x1x64xf32>
    %11 = vector.shape_cast %10 : vector<4x1x64xf32> to vector<4x64xf32>
    %cst_4 = arith.constant 0.000000e+00 : f32
    %12 = vector.broadcast %cst_4 : f32 to vector<4x64xf32>
    %13 = arith.subf %12, %11 : vector<4x64xf32>
    %14 = math.exp %13 : vector<4x64xf32>
    %cst_5 = arith.constant 1.000000e+00 : f32
    %15 = vector.broadcast %cst_5 : f32 to vector<4x64xf32>
    %16 = arith.addf %15, %14 : vector<4x64xf32>
    %cst_6 = arith.constant 1.000000e+00 : f32
    %17 = vector.broadcast %cst_6 : f32 to vector<4x64xf32>
    %18 = arith.divf %17, %16 : vector<4x64xf32>
    %19 = vector.extract_strided_slice %0 {offsets = [0, 2, 0], sizes = [4, 1, 64], strides = [1, 1, 1]} : vector<4x5x64xf32> to vector<4x1x64xf32>
    %20 = vector.shape_cast %19 : vector<4x1x64xf32> to vector<4x64xf32>
    %21 = math.exp %20 : vector<4x64xf32>
    %22 = vector.extract_strided_slice %0 {offsets = [0, 3, 0], sizes = [4, 1, 64], strides = [1, 1, 1]} : vector<4x5x64xf32> to vector<4x1x64xf32>
    %23 = vector.shape_cast %22 : vector<4x1x64xf32> to vector<4x64xf32>
    %24 = math.exp %23 : vector<4x64xf32>
    %c0_7 = arith.constant 0 : index
    %c0_8 = arith.constant 0 : index
    %25 = vector.load %arg2[%c0_7, %c0_8] : memref<2x64xf32, #tpu.memory_space<vmem>>, vector<1x64xf32>
    %26 = vector.broadcast %25 : vector<1x64xf32> to vector<4x64xf32>
    %27 = arith.addf %9, %26 : vector<4x64xf32>
    %c0_9 = arith.constant 0 : index
    %c0_10 = arith.constant 0 : index
    %c0_11 = arith.constant 0 : index
    %28 = vector.load %arg4[%c0_9, %c0_10, %c0_11] : memref<4x4x64xf32, #tpu.memory_space<vmem>>, vector<1x4x64xf32>
    %29 = vector.shape_cast %28 : vector<1x4x64xf32> to vector<4x64xf32>
    %30 = vector.shape_cast %27 : vector<4x64xf32> to vector<1x4x64xf32>
    tpu.vector_store %arg4[%c0_9, %c0_10, %c0_11], %30 {strides = array<i32>} : memref<4x4x64xf32, #tpu.memory_space<vmem>>, vector<1x4x64xf32>,
    %c1 = arith.constant 1 : index
    %c0_12 = arith.constant 0 : index
    %31 = vector.load %arg2[%c1, %c0_12] : memref<2x64xf32, #tpu.memory_space<vmem>>, vector<1x64xf32>
    %32 = vector.broadcast %31 : vector<1x64xf32> to vector<4x64xf32>
    %33 = arith.addf %18, %32 : vector<4x64xf32>
    %c1_13 = arith.constant 1 : index
    %c0_14 = arith.constant 0 : index
    %c0_15 = arith.constant 0 : index
    %34 = vector.load %arg4[%c1_13, %c0_14, %c0_15] : memref<4x4x64xf32, #tpu.memory_space<vmem>>, vector<1x4x64xf32>
    %35 = vector.shape_cast %34 : vector<1x4x64xf32> to vector<4x64xf32>
    %36 = vector.shape_cast %33 : vector<4x64xf32> to vector<1x4x64xf32>
    tpu.vector_store %arg4[%c1_13, %c0_14, %c0_15], %36 {strides = array<i32>} : memref<4x4x64xf32, #tpu.memory_space<vmem>>, vector<1x4x64xf32>,
    %c0_16 = arith.constant 0 : index
    %c0_17 = arith.constant 0 : index
    %37 = vector.load %arg3[%c0_16, %c0_17] : memref<4x2xf32, #tpu.memory_space<vmem>>, vector<4x1xf32>
    %38 = vector.broadcast %37 : vector<4x1xf32> to vector<4x64xf32>
    %39 = arith.mulf %21, %38 : vector<4x64xf32>
    %c2 = arith.constant 2 : index
    %c0_18 = arith.constant 0 : index
    %c0_19 = arith.constant 0 : index
    %40 = vector.load %arg4[%c2, %c0_18, %c0_19] : memref<4x4x64xf32, #tpu.memory_space<vmem>>, vector<1x4x64xf32>
    %41 = vector.shape_cast %40 : vector<1x4x64xf32> to vector<4x64xf32>
    %42 = vector.shape_cast %39 : vector<4x64xf32> to vector<1x4x64xf32>
    tpu.vector_store %arg4[%c2, %c0_18, %c0_19], %42 {strides = array<i32>} : memref<4x4x64xf32, #tpu.memory_space<vmem>>, vector<1x4x64xf32>,
    %c0_20 = arith.constant 0 : index
    %c1_21 = arith.constant 1 : index
    %43 = vector.load %arg3[%c0_20, %c1_21] : memref<4x2xf32, #tpu.memory_space<vmem>>, vector<4x1xf32>
    %44 = vector.broadcast %43 : vector<4x1xf32> to vector<4x64xf32>
    %45 = arith.mulf %24, %44 : vector<4x64xf32>
    %c3 = arith.constant 3 : index
    %c0_22 = arith.constant 0 : index
    %c0_23 = arith.constant 0 : index
    %46 = vector.load %arg4[%c3, %c0_22, %c0_23] : memref<4x4x64xf32, #tpu.memory_space<vmem>>, vector<1x4x64xf32>
    %47 = vector.shape_cast %46 : vector<1x4x64xf32> to vector<4x64xf32>
    %48 = vector.shape_cast %45 : vector<4x64xf32> to vector<1x4x64xf32>
    tpu.vector_store %arg4[%c3, %c0_22, %c0_23], %48 {strides = array<i32>} : memref<4x4x64xf32, #tpu.memory_space<vmem>>, vector<1x4x64xf32>,
    return
  }
  func.func @transform_0(%arg0: i32) -> (i32, i32, i32) {
    %c0_i32 = arith.constant 0 : i32
    %c0_i32_0 = arith.constant 0 : i32
    %c0_i32_1 = arith.constant 0 : i32
    return %arg0, %c0_i32, %c0_i32_0 : i32, i32, i32
  }
  func.func @transform_1(%arg0: i32) -> (i32, i32) {
    %c0_i32 = arith.constant 0 : i32
    %c0_i32_0 = arith.constant 0 : i32
    %c0_i32_1 = arith.constant 0 : i32
    return %c0_i32, %c0_i32_0 : i32, i32
  }
  func.func @transform_2(%arg0: i32) -> (i32, i32) {
    %c0_i32 = arith.constant 0 : i32
    %c0_i32_0 = arith.constant 0 : i32
    return %arg0, %c0_i32 : i32, i32
  }
  func.func @transform_3(%arg0: i32) -> (i32, i32, i32) {
    %c0_i32 = arith.constant 0 : i32
    %c0_i32_0 = arith.constant 0 : i32
    %c0_i32_1 = arith.constant 0 : i32
    return %c0_i32, %arg0, %c0_i32_0 : i32, i32, i32
  }
}

</mosaic_0001>

<llo_original>
// kernel: tpu_custom_call.1
$region0: #{tpu_custom_call.1}
  #allocation0 [shape = 'u32[]', space=smem, size = 0x4, offset = 0x4, fixed_abs, tag = 'smem constant byte address 0x4 - core index']
  #allocation1 [shape = 'u32[144,128]{1,0:T(1,128)}', space=vmem, size = 0x12000, scoped, tag = 'internal scratch']
  %s0 = inlined_call_operand.vmem [shape: f32[4,9,64], index: 0, kind: input, shape index: {}]
  %s1 = inlined_call_operand.vmem [shape: f32[2,64], index: 1, kind: input, shape index: {}]
  %s2 = inlined_call_operand.vmem [shape: f32[4,2], index: 2, kind: input, shape index: {}]
  %s3 = inlined_call_operand.hbm [shape: f32[4,4,64], index: 3, kind: output, shape index: {}]
  %s4 = sld [smem:[#allocation0]]
  $region22: #{tpu_custom_call.1} parent=0
    _
  %s6 = ssub.s32 1, %s4
  %s7 = scalar_select 0, %s6, %s4
  $region1: #{tpu_custom_call.1} parent=0
    #allocation2 [shape = 'u8[8192]{0}', space=vmem, size = 0x2000, scoped, tag = 'output window, operand 0, single buffered']
    #allocation3 [shape = 's32[1]{0}', space=sflag, size = 0x4, scoped, tag = 'scoped memory for tpu_custom_call.1']
    %8 = vsyncpa [#allocation3], 0
    // Predicated region
    $region2: #{tpu_custom_call.1} parent=1 // pred_check
      _
    $region3: #{tpu_custom_call.1} parent=1 // pred_check_branch
      %10 = sbr.rel (0) target = $region5
    $region4: #{tpu_custom_call.1} parent=1 // pred_region
      _
    $region5: #{tpu_custom_call.1} parent=1 // pred_fallthru
      _
    // Predicated region
    $region6: #{tpu_custom_call.1} parent=1 // pred_check
      _
    $region7: #{tpu_custom_call.1} parent=1 // pred_check_branch
      %12 = sbr.rel (0) target = $region9
    $region8: #{tpu_custom_call.1} parent=1 // pred_region
      _
    $region9: #{tpu_custom_call.1} parent=1 // pred_fallthru
      _
    // Predicated region
    $region10: #{tpu_custom_call.1} parent=1 // pred_check
      _
    $region11: #{tpu_custom_call.1} parent=1 // pred_check_branch
      %14 = sbr.rel (0) target = $region13
    $region12: #{tpu_custom_call.1} parent=1 // pred_region
      _
    $region13: #{tpu_custom_call.1} parent=1 // pred_fallthru
      _
    %v15 = vld [vmem:[%s0] sm:$0x1f]
    %v16 = vld [vmem:[%s0 + $0x10] sm:$0x1f]
    %v17 = vld [vmem:[%s0 + $0x20] sm:$0x1f]
    %v18 = vld [vmem:[%s0 + $0x30] sm:$0x1f]
    %v19 = vsub.f32 0.0, %v15
    %v20 = vsub.f32 0.0, %v16
    %v21 = vsub.f32 0.0, %v17
    %v22 = vsub.f32 0.0, %v18
    %v23 = vmul.f32 %v19, 1.442695
    %v24 = vpow.pop %v23
    %v25 = vmul.f32 %v20, 1.442695
    %v26 = vpow.pop %v25
    %v27 = vmul.f32 %v21, 1.442695
    %v28 = vpow.pop %v27
    %v29 = vmul.f32 %v22, 1.442695
    %v30 = vpow.pop %v29
    %v31 = vadd.f32 %v24, 1.0
    %v32 = vadd.f32 %v26, 1.0
    %v33 = vadd.f32 %v28, 1.0
    %v34 = vadd.f32 %v30, 1.0
    %v35 = vrcp.pop %v31
    %v36 = vmul.f32 1.0, %v35
    %v37 = vrcp.pop %v32
    %v38 = vmul.f32 1.0, %v37
    %v39 = vrcp.pop %v33
    %v40 = vmul.f32 1.0, %v39
    %v41 = vrcp.pop %v34
    %v42 = vmul.f32 1.0, %v41
    %v43 = vmul.f32 %v15, 1.442695
    %v44 = vpow.pop %v43
    %v45 = vmul.f32 %v16, 1.442695
    %v46 = vpow.pop %v45
    %v47 = vmul.f32 %v17, 1.442695
    %v48 = vpow.pop %v47
    %v49 = vmul.f32 %v18, 1.442695
    %v50 = vpow.pop %v49
    %v51 = vld [vmem:[%s1] sm:$0x1]
    %v52 = vlaneseq
    %v53 = vshrl.u32 %v52, 7
    %v54 = vsub.s32 0, %v53
    %v55 = vrot.slane %v51, %v54
    %v56 = vadd.f32 %v36, %v55
    %v57 = vadd.f32 %v38, %v55
    %v58 = vadd.f32 %v40, %v55
    %v59 = vadd.f32 %v42, %v55
    %v64 = vrot.slane %v57, 7
    %vm65 = vcmask 1041409
    %v66 = vsel %vm65, %v64, %v56
    %v67 = vrot.slane %v58, 6
    %vm68 = vcmask 1042434
    %v69 = vsel %vm68, %v67, %v66
    %v70 = vrot.slane %v59, 5
    %vm71 = vcmask 1043459
    %v72 = vsel %vm71, %v70, %v69
    %vm74 = vcmask 519168
    %75 = vst.msk [vmem:[#allocation2] sm:$0xf] %vm74, %v72
    %v76 = vld [vmem:[%s1 + $0x1] sm:$0x1]
    %v77 = vlaneseq
    %v78 = vshrl.u32 %v77, 7
    %v79 = vsub.s32 0, %v78
    %v80 = vrot.slane %v76, %v79
    %v81 = vadd.f32 %v36, %v80
    %v82 = vadd.f32 %v38, %v80
    %v83 = vadd.f32 %v40, %v80
    %v84 = vadd.f32 %v42, %v80
    %v89 = vrot.slane %v82, 7
    %v90 = vsel %vm68, %v89, %v81
    %v91 = vrot.slane %v83, 6
    %v92 = vsel %vm71, %v91, %v90
    %v93 = vrot.slane %v84, 5
    %vm94 = vcmask 1044484
    %v95 = vsel %vm94, %v93, %v92
    %s97 = scalar_lea.vmem [#allocation2], 4
    %vm98 = vcmask 520193
    %99 = vst.msk [vmem:[%s97 - $0x1] sm:$0x1e] %vm98, %v95
    %v100 = vld [vmem:[%s2] sm:$0xf]
    %102 = vset.pattern.permute.xlu0 0
    %103 = vperm.xlu0 %102, %v100
    %v104 = vpop.permute.xlu0 %103
    %v105 = vrot.slane %v104, 6
    %v106 = vrot.slane %v104, 7
    %v107 = vrot.slane %v104, 1
    %v112 = vmul.f32 %v44, %v105
    %v113 = vmul.f32 %v46, %v106
    %v114 = vmul.f32 %v48, %v104
    %v115 = vmul.f32 %v50, %v107
    %v120 = vrot.slane %v113, 7
    %v121 = vsel %vm71, %v120, %v112
    %v122 = vrot.slane %v114, 6
    %v123 = vsel %vm94, %v122, %v121
    %v124 = vrot.slane %v115, 5
    %vm125 = vcmask 1045509
    %v126 = vsel %vm125, %v124, %v123
    %s128 = scalar_lea.vmem [#allocation2], 8
    %vm129 = vcmask 521218
    %130 = vst.msk [vmem:[%s128 - $0x2] sm:$0x3c] %vm129, %v126
    %v131 = vld [vmem:[%s2] sm:$0xf]
    %133 = vset.pattern.permute.xlu0 1
    %134 = vperm.xlu0 %133, %v131
    %v135 = vpop.permute.xlu0 %134
    %v136 = vrot.slane %v135, 5
    %v137 = vrot.slane %v135, 6
    %v138 = vrot.slane %v135, 7
    %v143 = vmul.f32 %v44, %v136
    %v144 = vmul.f32 %v46, %v137
    %v145 = vmul.f32 %v48, %v138
    %v146 = vmul.f32 %v50, %v135
    %v151 = vrot.slane %v144, 7
    %v152 = vsel %vm94, %v151, %v143
    %v153 = vrot.slane %v145, 6
    %v154 = vsel %vm125, %v153, %v152
    %v155 = vrot.slane %v146, 5
    %vm156 = vcmask 1046534
    %v157 = vsel %vm156, %v155, %v154
    %s159 = scalar_lea.vmem [#allocation2], 12
    %vm160 = vcmask 522243
    %161 = vst.msk [vmem:[%s159 - $0x3] sm:$0x78] %vm160, %v157
    // Predicated region
    $region14: #{tpu_custom_call.1} parent=1 // pred_check
      _
    $region15: #{tpu_custom_call.1} parent=1 // pred_check_branch
      %163 = sbr.rel (0) target = $region17
    $region16: #{tpu_custom_call.1} parent=1 // pred_region
      %s165 = ssub.s32 256, 256
      %166 = vsyncadd [#allocation3], %s165
      %s167 = sshll.u32 [#allocation2], 4
      %s168 = int_to_ptr.vmem [resolvable:$true] %s167
      %173 = dma.vmem_to_hbm [thread:$0]  %s168, 256, %s3, [#allocation3], 64, 64, 4
    $region17: #{tpu_custom_call.1} parent=1 // pred_fallthru
      _
    // Predicated region
    $region18: #{tpu_custom_call.1} parent=1 // pred_check
      _
    $region19: #{tpu_custom_call.1} parent=1 // pred_check_branch
      %175 = sbr.rel (0) target = $region21
    $region20: #{tpu_custom_call.1} parent=1 // pred_region
      %176 = dma.done [#allocation3], 256
    $region21: #{tpu_custom_call.1} parent=1 // pred_fallthru
      _
    %177 = vsyncpa [#allocation3], 1

</llo_original>
